<compile_context>
chip_gen: v6e
topology: v6e:2x2x1
jax: 0.10.0
libtpu: 0.0.40
codegen_flags: <defaults>
</compile_context>

<pallas_src>
import functools

import jax
import jax.numpy as jnp
from jax import lax
from jax.experimental import pallas as pl
from jax.experimental.pallas import tpu as pltpu

EPS = 1e-5


def _round_up(x, m):
    return ((x + m - 1) // m) * m


def _round_down(x, m):
    return (x // m) * m


def _vmem_capacity_bytes():
    try:
        info = pltpu.get_tpu_info()
        cap = getattr(info, "vmem_capacity_bytes", None)
        if cap:
            return int(cap)
    except Exception:
        pass
    return 64 * 1024 * 1024  # conservative fallback (v7x per-TC VMEM)


def _pick_tile_c(c, c128, max_tile):
    """Lane-dense channel tile: multiple of 128, or the exact full width."""
    if c <= 128:
        return c
    max_tile = max(128, _round_down(max_tile, 128))
    if c >= 256:
        # v7x: keep at least 2 channel tiles so both TensorCores get work
        # (neutral on single-TC v5e/v6e).
        max_tile = min(max_tile, max(128, _round_down(c128 // 2, 128)))
    # Prefer a single exact-width block when it fits (no OOB lanes at all).
    return c if max_tile >= c128 else min(max_tile, c128)


def _bn_resident_kernel(x_ref, gamma_ref, beta_ref, o_ref, *, n_true):
    """Whole batch resident in VMEM: (N, TILE_C) block, two-pass variance."""
    x = x_ref[...].astype(jnp.float32)
    inv_n = jnp.float32(1.0 / n_true)
    mean = jnp.sum(x, axis=0, keepdims=True) * inv_n            # (1, TILE_C)
    xc = x - mean
    var = jnp.sum(xc * xc, axis=0, keepdims=True) * inv_n       # biased var
    inv_std = lax.rsqrt(var + jnp.float32(EPS))
    # Fold the affine transform into one per-channel scale/bias so the
    # (N, TILE_C) pass is a single mul + add per element.
    scale = gamma_ref[...].astype(jnp.float32) * inv_std
    bias = beta_ref[...].astype(jnp.float32) - mean * scale
    o_ref[...] = (x * scale + bias).astype(o_ref.dtype)


def _bn_tiled_kernel(x_ref, gamma_ref, beta_ref, o_ref,
                     sum_ref, ss_ref, scale_ref, bias_ref, *,
                     n_true, tile_n):
    """Large-N path: phase 0 accumulates stats, phase 1 applies them."""
    p = pl.program_id(1)        # phase: 0 = statistics, 1 = apply
    i = pl.program_id(2)        # N-tile index (reduction axis, last)
    nb = pl.num_programs(2)

    @pl.when((p == 0) & (i == 0))
    def _init():
        sum_ref[...] = jnp.zeros_like(sum_ref)
        ss_ref[...] = jnp.zeros_like(ss_ref)

    @pl.when(p == 0)
    def _accumulate():
        x = x_ref[...].astype(jnp.float32)
        rows = lax.broadcasted_iota(jnp.int32, x.shape, 0) + i * tile_n
        xm = jnp.where(rows < n_true, x, 0.0)   # mask OOB rows of edge block
        sum_ref[...] += jnp.sum(xm, axis=0, keepdims=True)
        ss_ref[...] += jnp.sum(xm * xm, axis=0, keepdims=True)

    @pl.when((p == 0) & (i == nb - 1))
    def _finalize():
        inv_n = jnp.float32(1.0 / n_true)
        mean = sum_ref[...] * inv_n
        var = jnp.maximum(ss_ref[...] * inv_n - mean * mean, 0.0)
        inv_std = lax.rsqrt(var + jnp.float32(EPS))
        scale = gamma_ref[...].astype(jnp.float32) * inv_std
        scale_ref[...] = scale
        bias_ref[...] = beta_ref[...].astype(jnp.float32) - mean * scale

    @pl.when(p == 1)
    def _apply():
        x = x_ref[...].astype(jnp.float32)
        o_ref[...] = (x * scale_ref[...] + bias_ref[...]).astype(o_ref.dtype)


def split_forward(x, gamma, beta, *, force_path=None):
    """Forward pass of `Split` (== BatchNorm1d in training mode) on TPU."""
    n, c = x.shape
    out_dtype = x.dtype
    gamma2 = gamma.reshape(1, c)
    beta2 = beta.reshape(1, c)

    # Generation-aware VMEM budget.
    vmem_cap = _vmem_capacity_bytes()                       # 128 MiB v5e/v6e, 64 MiB v7x
    vmem_limit = min((vmem_cap * 3) // 4, 96 * 1024 * 1024)  # ~96 / ~48 MiB
    budget = (vmem_limit * 4) // 5                           # ~20% headroom

    in_item = jnp.dtype(x.dtype).itemsize
    out_item = jnp.dtype(out_dtype).itemsize
    # Approx VMEM bytes per block element: double-buffered input + output
    # plus ~3 live f32 temporaries inside the kernel body.
    per_elem = 2 * in_item + 2 * out_item + 12

    c128 = _round_up(c, 128)
    min_lane = c if c < 128 else 128
    resident_ok = n * min_lane * per_elem <= budget
    if force_path == "resident":
        resident_ok = True
    elif force_path == "tiled":
        resident_ok = False

    if resident_ok:
        # ---- Path A: whole batch resident per channel tile (1 read + 1 write).
        tile_c = _pick_tile_c(c, c128, budget // max(n * per_elem, 1))
        grid = (pl.cdiv(c, tile_c),)
        kernel = functools.partial(_bn_resident_kernel, n_true=n)
        return pl.pallas_call(
            kernel,
            out_shape=jax.ShapeDtypeStruct((n, c), out_dtype),
            grid_spec=pl.GridSpec(
                grid=grid,
                in_specs=[
                    pl.BlockSpec((n, tile_c), lambda j: (0, j)),
                    pl.BlockSpec((1, tile_c), lambda j: (0, j)),
                    pl.BlockSpec((1, tile_c), lambda j: (0, j)),
                ],
                out_specs=pl.BlockSpec((n, tile_c), lambda j: (0, j)),
            ),
            compiler_params=pltpu.CompilerParams(
                dimension_semantics=("parallel",),
                vmem_limit_bytes=vmem_limit,
            ),
        )(x, gamma2, beta2)

    # ---- Path B: large N — tile over N with a 2-phase (stats, apply) sweep.
    tile_c = _pick_tile_c(c, c128, 512)
    tile_n = _round_down(budget // max(tile_c * per_elem, 1), 8)
    tile_n = max(8, min(tile_n, _round_up(n, 8), 4096))
    grid = (pl.cdiv(c, tile_c), 2, pl.cdiv(n, tile_n))
    kernel = functools.partial(_bn_tiled_kernel, n_true=n, tile_n=tile_n)
    return pl.pallas_call(
        kernel,
        out_shape=jax.ShapeDtypeStruct((n, c), out_dtype),
        grid_spec=pltpu.PrefetchScalarGridSpec(
            num_scalar_prefetch=0,
            grid=grid,
            in_specs=[
                pl.BlockSpec((tile_n, tile_c), lambda j, p, i: (i, j)),
                pl.BlockSpec((1, tile_c), lambda j, p, i: (0, j)),
                pl.BlockSpec((1, tile_c), lambda j, p, i: (0, j)),
            ],
            # Phase 0 pins the output block (no writes happen); phase 1 walks N.
            out_specs=pl.BlockSpec((tile_n, tile_c), lambda j, p, i: (i * p, j)),
            scratch_shapes=[
                pltpu.VMEM((1, tile_c), jnp.float32),   # sum
                pltpu.VMEM((1, tile_c), jnp.float32),   # sum of squares
                pltpu.VMEM((1, tile_c), jnp.float32),   # folded scale
                pltpu.VMEM((1, tile_c), jnp.float32),   # folded bias
            ],
        ),
        compiler_params=pltpu.CompilerParams(
            dimension_semantics=("parallel", "arbitrary", "arbitrary"),
            vmem_limit_bytes=vmem_limit,
        ),
    )(x, gamma2, beta2)


def _reference(x, gamma, beta):
    x32 = x.astype(jnp.float32)
    mean = jnp.mean(x32, axis=0, keepdims=True)
    var = jnp.mean((x32 - mean) ** 2, axis=0, keepdims=True)
    return ((x32 - mean) / jnp.sqrt(var + EPS)) * gamma[None, :] + beta[None, :]


if __name__ == "__main__":
    key = jax.random.PRNGKey(0)

    def _run_case(n, c, dtype, force_path, tol, k):
        kx, kg, kb = jax.random.split(k, 3)
        x = jax.random.normal(kx, (n, c), dtype=jnp.float32).astype(dtype)
        # PyTorch BatchNorm1d defaults are gamma=1, beta=0; perturb slightly so
        # the affine path is actually exercised (deterministic from PRNGKey(0)).
        gamma = jnp.ones((c,), jnp.float32) + 0.1 * jax.random.normal(
            kg, (c,), dtype=jnp.float32)
        beta = 0.1 * jax.random.normal(kb, (c,), dtype=jnp.float32)

        y = jax.block_until_ready(
            split_forward(x, gamma, beta, force_path=force_path))
        y_ref = _reference(x, gamma, beta)
        assert y.shape == (n, c)
        assert y.dtype == dtype
        err = jnp.max(jnp.abs(y.astype(jnp.float32) - y_ref))
        assert err < tol, f"max err {err} (n={n}, c={c}, {dtype}, {force_path})"

    k1, k2, k3 = jax.random.split(key, 3)
    # BatchNorm1d(out_size=32) on a small batch -- the module's nominal case.
    _run_case(16, 32, jnp.float32, None, 1e-4, k1)
    # Large-N (2-phase tiled) path forced at a small shape for coverage.
    _run_case(100, 300, jnp.float32, "tiled", 1e-3, k2)
    # Native bf16 in/out (no upcast in HBM; output written back as bf16).
    _run_case(64, 192, jnp.bfloat16, None, 5e-2, k3)

    print("KERNEL_OK")
</pallas_src>

<mosaic_0001>
module attributes {stable_mosaic.version = 11 : i64} {
  func.func @_bn_resident_kernel(%arg0: i32, %arg1: memref<16x32xf32, #tpu.memory_space<vmem>>, %arg2: memref<1x32xf32, #tpu.memory_space<vmem>>, %arg3: memref<1x32xf32, #tpu.memory_space<vmem>>, %arg4: memref<16x32xf32, #tpu.memory_space<vmem>>) attributes {dimension_semantics = [#tpu.dimension_semantics<parallel>], iteration_bounds = array<i64: 1>, scalar_prefetch = 0 : i64, scratch_operands = 0 : i64, tpu.core_type = #tpu.core_type<tc>, window_params = [{transform_indices = @transform_0, window_bounds = array<i64: 16, 32>}, {transform_indices = @transform_1, window_bounds = array<i64: 1, 32>}, {transform_indices = @transform_2, window_bounds = array<i64: 1, 32>}, {transform_indices = @transform_3, window_bounds = array<i64: 16, 32>}]} {
    %c0 = arith.constant 0 : index
    %c0_0 = arith.constant 0 : index
    %0 = vector.load %arg1[%c0, %c0_0] : memref<16x32xf32, #tpu.memory_space<vmem>>, vector<16x32xf32>
    %cst = arith.constant dense<0.000000e+00> : vector<32xf32>
    %1 = vector.multi_reduction <add>, %0, %cst [0] : vector<16x32xf32> to vector<32xf32>
    %2 = vector.shape_cast %1 : vector<32xf32> to vector<1x32xf32>
    %cst_1 = arith.constant 6.250000e-02 : f32
    %3 = vector.broadcast %cst_1 : f32 to vector<1x32xf32>
    %4 = arith.mulf %2, %3 : vector<1x32xf32>
    %5 = vector.broadcast %4 : vector<1x32xf32> to vector<16x32xf32>
    %6 = arith.subf %0, %5 : vector<16x32xf32>
    %7 = arith.mulf %6, %6 : vector<16x32xf32>
    %cst_2 = arith.constant dense<0.000000e+00> : vector<32xf32>
    %8 = vector.multi_reduction <add>, %7, %cst_2 [0] : vector<16x32xf32> to vector<32xf32>
    %9 = vector.shape_cast %8 : vector<32xf32> to vector<1x32xf32>
    %cst_3 = arith.constant 6.250000e-02 : f32
    %10 = vector.broadcast %cst_3 : f32 to vector<1x32xf32>
    %11 = arith.mulf %9, %10 : vector<1x32xf32>
    %cst_4 = arith.constant 9.99999974E-6 : f32
    %12 = vector.broadcast %cst_4 : f32 to vector<1x32xf32>
    %13 = arith.addf %11, %12 : vector<1x32xf32>
    %14 = math.rsqrt %13 : vector<1x32xf32>
    %c0_5 = arith.constant 0 : index
    %c0_6 = arith.constant 0 : index
    %15 = vector.load %arg2[%c0_5, %c0_6] : memref<1x32xf32, #tpu.memory_space<vmem>>, vector<1x32xf32>
    %16 = arith.mulf %15, %14 : vector<1x32xf32>
    %c0_7 = arith.constant 0 : index
    %c0_8 = arith.constant 0 : index
    %17 = vector.load %arg3[%c0_7, %c0_8] : memref<1x32xf32, #tpu.memory_space<vmem>>, vector<1x32xf32>
    %18 = arith.mulf %4, %16 : vector<1x32xf32>
    %19 = arith.subf %17, %18 : vector<1x32xf32>
    %20 = vector.broadcast %16 : vector<1x32xf32> to vector<16x32xf32>
    %21 = arith.mulf %0, %20 : vector<16x32xf32>
    %22 = vector.broadcast %19 : vector<1x32xf32> to vector<16x32xf32>
    %23 = arith.addf %21, %22 : vector<16x32xf32>
    %c0_9 = arith.constant 0 : index
    %c0_10 = arith.constant 0 : index
    %24 = vector.load %arg4[%c0_9, %c0_10] : memref<16x32xf32, #tpu.memory_space<vmem>>, vector<16x32xf32>
    tpu.vector_store %arg4[%c0_9, %c0_10], %23 {strides = array<i32>} : memref<16x32xf32, #tpu.memory_space<vmem>>, vector<16x32xf32>,
    return
  }
  func.func @transform_0(%arg0: i32) -> (i32, i32) {
    %c0_i32 = arith.constant 0 : i32
    %c0_i32_0 = arith.constant 0 : i32
    return %c0_i32, %arg0 : i32, i32
  }
  func.func @transform_1(%arg0: i32) -> (i32, i32) {
    %c0_i32 = arith.constant 0 : i32
    %c0_i32_0 = arith.constant 0 : i32
    return %c0_i32, %arg0 : i32, i32
  }
  func.func @transform_2(%arg0: i32) -> (i32, i32) {
    %c0_i32 = arith.constant 0 : i32
    %c0_i32_0 = arith.constant 0 : i32
    return %c0_i32, %arg0 : i32, i32
  }
  func.func @transform_3(%arg0: i32) -> (i32, i32) {
    %c0_i32 = arith.constant 0 : i32
    %c0_i32_0 = arith.constant 0 : i32
    return %c0_i32, %arg0 : i32, i32
  }
}

</mosaic_0001>

<llo_original>
// kernel: tpu_custom_call.1
$region0: #{tpu_custom_call.1}
  #allocation0 [shape = 'u32[]', space=smem, size = 0x4, offset = 0x4, fixed_abs, tag = 'smem constant byte address 0x4 - core index']
  #allocation1 [shape = 'u32[144,128]{1,0:T(1,128)}', space=vmem, size = 0x12000, scoped, tag = 'internal scratch']
  %s0 = inlined_call_operand.hbm [shape: f32[16,32], index: 0, kind: input, shape index: {}]
  %s1 = inlined_call_operand.vmem [shape: f32[1,32], index: 1, kind: input, shape index: {}]
  %s2 = inlined_call_operand.vmem [shape: f32[1,32], index: 2, kind: input, shape index: {}]
  %s3 = inlined_call_operand.hbm [shape: f32[16,32], index: 3, kind: output, shape index: {}]
  %s4 = sld [smem:[#allocation0]]
  $region26: #{tpu_custom_call.1} parent=0
    _
  %s6 = ssub.s32 1, %s4
  %s7 = scalar_select 0, %s6, %s4
  $region1: #{tpu_custom_call.1} parent=0
    #allocation2 [shape = 'u8[8192]{0}', space=vmem, size = 0x2000, scoped, tag = 'input window, operand 0, single buffered']
    #allocation3 [shape = 's32[1]{0}', space=sflag, size = 0x4, scoped, tag = 'scoped memory for tpu_custom_call.1']
    #allocation4 [shape = 's32[1]{0}', space=sflag, size = 0x4, scoped, tag = 'scoped memory for tpu_custom_call.1']
    #allocation5 [shape = 'u8[8192]{0}', space=vmem, size = 0x2000, scoped, tag = 'output window, operand 0, single buffered']
    %8 = vsyncpa [#allocation3], 0
    %9 = vsyncpa [#allocation4], 0
    // Predicated region
    $region2: #{tpu_custom_call.1} parent=1 // pred_check
      _
    $region3: #{tpu_custom_call.1} parent=1 // pred_check_branch
      %11 = sbr.rel (0) target = $region5
    $region4: #{tpu_custom_call.1} parent=1 // pred_region
      %s13 = ssub.s32 256, 256
      %14 = vsyncadd [#allocation3], %s13
      %s15 = sshll.u32 [#allocation2], 4
      %s16 = int_to_ptr.vmem [resolvable:$true] %s15
      %21 = dma.hbm_to_vmem [thread:$0]  %s0, 256, %s16, [#allocation3], 128, 128, 8
    $region5: #{tpu_custom_call.1} parent=1 // pred_fallthru
      _
    // Predicated region
    $region6: #{tpu_custom_call.1} parent=1 // pred_check
      _
    $region7: #{tpu_custom_call.1} parent=1 // pred_check_branch
      %23 = sbr.rel (0) target = $region9
    $region8: #{tpu_custom_call.1} parent=1 // pred_region
      _
    $region9: #{tpu_custom_call.1} parent=1 // pred_fallthru
      _
    // Predicated region
    $region10: #{tpu_custom_call.1} parent=1 // pred_check
      _
    $region11: #{tpu_custom_call.1} parent=1 // pred_check_branch
      %25 = sbr.rel (0) target = $region13
    $region12: #{tpu_custom_call.1} parent=1 // pred_region
      _
    $region13: #{tpu_custom_call.1} parent=1 // pred_fallthru
      _
    // Predicated region
    $region14: #{tpu_custom_call.1} parent=1 // pred_check
      _
    $region15: #{tpu_custom_call.1} parent=1 // pred_check_branch
      %27 = sbr.rel (0) target = $region17
    $region16: #{tpu_custom_call.1} parent=1 // pred_region
      %28 = dma.done [#allocation3], 256
    $region17: #{tpu_custom_call.1} parent=1 // pred_fallthru
      _
    %v29 = vld [vmem:[#allocation2] sm:$0xff]
    %v30 = vld [vmem:[#allocation2 + $0x8] sm:$0xff]
    %vm31 = vcmask 261120
    %v32 = vsel %vm31, %v29, 0.0
    %v33 = vsel %vm31, %v30, 0.0
    %v34 = vadd.f32 %v32, %v33
    %v35 = vrot.slane %v34, 4
    %v36 = vadd.f32 %v34, %v35
    %v37 = vrot.slane %v36, 2
    %v38 = vadd.f32 %v36, %v37
    %v39 = vrot.slane %v38, 1
    %v40 = vadd.f32 %v38, %v39
    %v41 = vmul.f32 %v40, 0.0625
    %v42 = vsub.f32 %v29, %v41
    %v43 = vsub.f32 %v30, %v41
    %v44 = vmul.f32 %v42, %v42
    %v45 = vmul.f32 %v43, %v43
    %v46 = vsel %vm31, %v44, 0.0
    %v47 = vsel %vm31, %v45, 0.0
    %v48 = vadd.f32 %v46, %v47
    %v49 = vrot.slane %v48, 4
    %v50 = vadd.f32 %v48, %v49
    %v51 = vrot.slane %v50, 2
    %v52 = vadd.f32 %v50, %v51
    %v53 = vrot.slane %v52, 1
    %v54 = vadd.f32 %v52, %v53
    %v55 = vmul.f32 %v54, 0.0625
    %v56 = vadd.f32 %v55, 1e-05
    %v57 = vrsqrt.pop %v56
    %v58 = vld [vmem:[%s1] sm:$0x1]
    %v59 = vmul.f32 %v58, %v57
    %v60 = vld [vmem:[%s2] sm:$0x1]
    %v61 = vmul.f32 %v41, %v59
    %v62 = vsub.f32 %v60, %v61
    %v64 = vlaneseq
    %v65 = vshrl.u32 %v64, 7
    %v66 = vsub.s32 0, %v65
    %v67 = vrot.slane %v59, %v66
    %v69 = vmul.f32 %v29, %v67
    %v70 = vmul.f32 %v30, %v67
    %v72 = vlaneseq
    %v73 = vshrl.u32 %v72, 7
    %v74 = vsub.s32 0, %v73
    %v75 = vrot.slane %v62, %v74
    %v77 = vadd.f32 %v69, %v75
    %v78 = vadd.f32 %v70, %v75
    %79 = vst.msk [vmem:[#allocation5] sm:$0xff] %vm31, %v77
    %80 = vst.msk [vmem:[#allocation5 + $0x8] sm:$0xff] %vm31, %v78
    // Predicated region
    $region18: #{tpu_custom_call.1} parent=1 // pred_check
      _
    $region19: #{tpu_custom_call.1} parent=1 // pred_check_branch
      %82 = sbr.rel (0) target = $region21
    $region20: #{tpu_custom_call.1} parent=1 // pred_region
      %s84 = ssub.s32 256, 256
      %85 = vsyncadd [#allocation4], %s84
      %s86 = sshll.u32 [#allocation5], 4
      %s87 = int_to_ptr.vmem [resolvable:$true] %s86
      %92 = dma.vmem_to_hbm [thread:$0]  %s87, 256, %s3, [#allocation4], 128, 128, 8
    $region21: #{tpu_custom_call.1} parent=1 // pred_fallthru
      _
    // Predicated region
    $region22: #{tpu_custom_call.1} parent=1 // pred_check
      _
    $region23: #{tpu_custom_call.1} parent=1 // pred_check_branch
      %94 = sbr.rel (0) target = $region25
    $region24: #{tpu_custom_call.1} parent=1 // pred_region
      %95 = dma.done [#allocation4], 256
    $region25: #{tpu_custom_call.1} parent=1 // pred_fallthru
      _
    %96 = vsyncpa [#allocation3], 1
    %97 = vsyncpa [#allocation4], 1

</llo_original>
